<compile_context>
chip_gen: v7x
topology: tpu7x:2x2x1
jax: 0.10.0
libtpu: 0.0.40
codegen_flags: <defaults>
</compile_context>

<pallas_src>
import numpy as np
import jax
import jax.numpy as jnp
from jax import lax
from jax.experimental import pallas as pl
from jax.experimental.pallas import tpu as pltpu


def _gather_rows_kernel(idx_ref, konf_ref, out_ref):
    """Gather sublane rows of a lane-dense konf slab.

    idx_ref  : SMEM (n_sel,) int32        -- scalar-prefetched konf_indices
    konf_ref : VMEM (K, B*dim_konf)       -- whole konf slab (single DMA)
    out_ref  : VMEM (n_sel, B*dim_konf)   -- gathered rows (single DMA out)
    """
    n_sel = out_ref.shape[0]

    def body(j, carry):
        out_ref[pl.ds(j, 1), :] = konf_ref[pl.ds(idx_ref[j], 1), :]
        return carry

    lax.fori_loop(0, n_sel, body, 0, unroll=True)


def filter_data_according_to_cases(konf, pose_ids, konf_indices):
    """Pallas equivalent of BaseModel.filter_data_according_to_cases for the
    two_arm / 'pick' configuration (dim_konf=2, dim_pose_ids=10)."""
    B, K, C, _ = konf.shape
    dk = 2                                  # 'pick' branch: konf[:, :, 0:2, :]
    n_sel = int(konf_indices.shape[0])

    # Guard against OOB indices (only DMA-level bounds checks exist on TPU).
    idx = jnp.clip(konf_indices.astype(jnp.int32), 0, K - 1)

    # Lane-dense presentation: (B, K, C, 1) -> (K, B*dk).
    # Channel slice + transpose/reshape are trivial XLA ops on <1 KiB of data.
    konf_kbc = jnp.transpose(konf[:, :, :dk, 0], (1, 0, 2)).reshape(K, B * dk)

    # NOTE: at these sizes a plain jnp.take (or fusing the gather into the
    # downstream consumer kernel's index_map) would avoid the kernel launch
    # entirely; the Pallas gather is kept as the explicit kernel requested.
    gathered = pl.pallas_call(
        _gather_rows_kernel,
        grid_spec=pltpu.PrefetchScalarGridSpec(
            num_scalar_prefetch=1,          # konf_indices -> SMEM
            grid=(1,),                      # single step: one DMA in, one out
            in_specs=[pl.BlockSpec((K, B * dk), lambda i, idx_ref: (0, 0))],
            out_specs=pl.BlockSpec((n_sel, B * dk), lambda i, idx_ref: (0, 0)),
        ),
        out_shape=jax.ShapeDtypeStruct((n_sel, B * dk), konf.dtype),
        compiler_params=pltpu.CompilerParams(
            dimension_semantics=("arbitrary",)),
    )(idx, konf_kbc)

    # Back to the PyTorch layout (B, n_sel, dk, 1).
    konf_out = jnp.transpose(gathered.reshape(n_sel, B, dk), (1, 0, 2))[..., None]

    # pose_ids slice/concat (identity for dim_pose_ids == 10) done in plain JAX;
    # not worth a kernel output.
    assert pose_ids.shape[-1] >= 10, "two_arm config expects dim_pose_ids >= 10"
    pose_out = jnp.concatenate([pose_ids[:, 0:4], pose_ids[:, -6:]], axis=-1)

    return konf_out, pose_out


if __name__ == "__main__":
    key = jax.random.PRNGKey(0)
    k1, k2 = jax.random.split(key)

    B = 2          # batch
    K = 20         # number of key configurations (synthetic; real ones from prm.pkl)
    C = 4          # konf channels before the 'pick' 0:2 slice
    Dp = 10        # dim_pose_ids = 8 + 2 for two_arm

    konf = jax.random.normal(k1, (B, K, C, 1), dtype=jnp.float32)
    pose_ids = jax.random.normal(k2, (B, Dp), dtype=jnp.float32)

    # TODO(synk): konf_indices come from get_indices_to_delete('home_region', prm.pkl);
    # use a deterministic synthetic subset instead.
    konf_indices = jnp.array(np.arange(0, K, 2, dtype=np.int32))  # 10 selected rows

    konf_out, pose_out = filter_data_according_to_cases(konf, pose_ids, konf_indices)
    jax.block_until_ready((konf_out, pose_out))

    # Plain-JAX reference check.
    konf_ref = konf[:, :, 0:2, :][:, np.asarray(konf_indices), :, :]
    pose_ref = jnp.concatenate([pose_ids[:, 0:4], pose_ids[:, -6:]], axis=-1)
    assert konf_out.shape == konf_ref.shape
    assert jnp.allclose(konf_out, konf_ref)
    assert jnp.allclose(pose_out, pose_ref)

    print("KERNEL_OK")
</pallas_src>

<mosaic_0001>
module attributes {stable_mosaic.version = 11 : i64} {
  func.func @_gather_rows_kernel(%arg0: i32, %arg1: memref<10xi32, #tpu.memory_space<smem>>, %arg2: memref<20x4xf32, #tpu.memory_space<vmem>>, %arg3: memref<10x4xf32, #tpu.memory_space<vmem>>) attributes {dimension_semantics = [#tpu.dimension_semantics<arbitrary>], iteration_bounds = array<i64: 1>, scalar_prefetch = 1 : i64, scratch_operands = 0 : i64, tpu.core_type = #tpu.core_type<tc>, window_params = [{pipeline_mode = #tpu.pipeline_mode<synchronous>, transform_indices = @transform_0, window_bounds = array<i64: 20, 4>}, {pipeline_mode = #tpu.pipeline_mode<synchronous>, transform_indices = @transform_1, window_bounds = array<i64: 10, 4>}]} {
    %c0_i32 = arith.constant 0 : i32
    %0 = arith.index_cast %c0_i32 : i32 to index
    %1 = memref.load %arg1[%0] : memref<10xi32, #tpu.memory_space<smem>>
    %2 = arith.index_cast %1 : i32 to index
    %c0 = arith.constant 0 : index
    %3 = vector.load %arg2[%2, %c0] : memref<20x4xf32, #tpu.memory_space<vmem>>, vector<1x4xf32>
    %4 = arith.index_cast %c0_i32 : i32 to index
    %c0_0 = arith.constant 0 : index
    %5 = vector.load %arg3[%4, %c0_0] : memref<10x4xf32, #tpu.memory_space<vmem>>, vector<1x4xf32>
    tpu.vector_store %arg3[%4, %c0_0], %3 {strides = array<i32>} : memref<10x4xf32, #tpu.memory_space<vmem>>, vector<1x4xf32>,
    %c1_i32 = arith.constant 1 : i32
    %6 = arith.index_cast %c1_i32 : i32 to index
    %7 = memref.load %arg1[%6] : memref<10xi32, #tpu.memory_space<smem>>
    %8 = arith.index_cast %7 : i32 to index
    %c0_1 = arith.constant 0 : index
    %9 = vector.load %arg2[%8, %c0_1] : memref<20x4xf32, #tpu.memory_space<vmem>>, vector<1x4xf32>
    %10 = arith.index_cast %c1_i32 : i32 to index
    %c0_2 = arith.constant 0 : index
    %11 = vector.load %arg3[%10, %c0_2] : memref<10x4xf32, #tpu.memory_space<vmem>>, vector<1x4xf32>
    tpu.vector_store %arg3[%10, %c0_2], %9 {strides = array<i32>} : memref<10x4xf32, #tpu.memory_space<vmem>>, vector<1x4xf32>,
    %c2_i32 = arith.constant 2 : i32
    %12 = arith.index_cast %c2_i32 : i32 to index
    %13 = memref.load %arg1[%12] : memref<10xi32, #tpu.memory_space<smem>>
    %14 = arith.index_cast %13 : i32 to index
    %c0_3 = arith.constant 0 : index
    %15 = vector.load %arg2[%14, %c0_3] : memref<20x4xf32, #tpu.memory_space<vmem>>, vector<1x4xf32>
    %16 = arith.index_cast %c2_i32 : i32 to index
    %c0_4 = arith.constant 0 : index
    %17 = vector.load %arg3[%16, %c0_4] : memref<10x4xf32, #tpu.memory_space<vmem>>, vector<1x4xf32>
    tpu.vector_store %arg3[%16, %c0_4], %15 {strides = array<i32>} : memref<10x4xf32, #tpu.memory_space<vmem>>, vector<1x4xf32>,
    %c3_i32 = arith.constant 3 : i32
    %18 = arith.index_cast %c3_i32 : i32 to index
    %19 = memref.load %arg1[%18] : memref<10xi32, #tpu.memory_space<smem>>
    %20 = arith.index_cast %19 : i32 to index
    %c0_5 = arith.constant 0 : index
    %21 = vector.load %arg2[%20, %c0_5] : memref<20x4xf32, #tpu.memory_space<vmem>>, vector<1x4xf32>
    %22 = arith.index_cast %c3_i32 : i32 to index
    %c0_6 = arith.constant 0 : index
    %23 = vector.load %arg3[%22, %c0_6] : memref<10x4xf32, #tpu.memory_space<vmem>>, vector<1x4xf32>
    tpu.vector_store %arg3[%22, %c0_6], %21 {strides = array<i32>} : memref<10x4xf32, #tpu.memory_space<vmem>>, vector<1x4xf32>,
    %c4_i32 = arith.constant 4 : i32
    %24 = arith.index_cast %c4_i32 : i32 to index
    %25 = memref.load %arg1[%24] : memref<10xi32, #tpu.memory_space<smem>>
    %26 = arith.index_cast %25 : i32 to index
    %c0_7 = arith.constant 0 : index
    %27 = vector.load %arg2[%26, %c0_7] : memref<20x4xf32, #tpu.memory_space<vmem>>, vector<1x4xf32>
    %28 = arith.index_cast %c4_i32 : i32 to index
    %c0_8 = arith.constant 0 : index
    %29 = vector.load %arg3[%28, %c0_8] : memref<10x4xf32, #tpu.memory_space<vmem>>, vector<1x4xf32>
    tpu.vector_store %arg3[%28, %c0_8], %27 {strides = array<i32>} : memref<10x4xf32, #tpu.memory_space<vmem>>, vector<1x4xf32>,
    %c5_i32 = arith.constant 5 : i32
    %30 = arith.index_cast %c5_i32 : i32 to index
    %31 = memref.load %arg1[%30] : memref<10xi32, #tpu.memory_space<smem>>
    %32 = arith.index_cast %31 : i32 to index
    %c0_9 = arith.constant 0 : index
    %33 = vector.load %arg2[%32, %c0_9] : memref<20x4xf32, #tpu.memory_space<vmem>>, vector<1x4xf32>
    %34 = arith.index_cast %c5_i32 : i32 to index
    %c0_10 = arith.constant 0 : index
    %35 = vector.load %arg3[%34, %c0_10] : memref<10x4xf32, #tpu.memory_space<vmem>>, vector<1x4xf32>
    tpu.vector_store %arg3[%34, %c0_10], %33 {strides = array<i32>} : memref<10x4xf32, #tpu.memory_space<vmem>>, vector<1x4xf32>,
    %c6_i32 = arith.constant 6 : i32
    %36 = arith.index_cast %c6_i32 : i32 to index
    %37 = memref.load %arg1[%36] : memref<10xi32, #tpu.memory_space<smem>>
    %38 = arith.index_cast %37 : i32 to index
    %c0_11 = arith.constant 0 : index
    %39 = vector.load %arg2[%38, %c0_11] : memref<20x4xf32, #tpu.memory_space<vmem>>, vector<1x4xf32>
    %40 = arith.index_cast %c6_i32 : i32 to index
    %c0_12 = arith.constant 0 : index
    %41 = vector.load %arg3[%40, %c0_12] : memref<10x4xf32, #tpu.memory_space<vmem>>, vector<1x4xf32>
    tpu.vector_store %arg3[%40, %c0_12], %39 {strides = array<i32>} : memref<10x4xf32, #tpu.memory_space<vmem>>, vector<1x4xf32>,
    %c7_i32 = arith.constant 7 : i32
    %42 = arith.index_cast %c7_i32 : i32 to index
    %43 = memref.load %arg1[%42] : memref<10xi32, #tpu.memory_space<smem>>
    %44 = arith.index_cast %43 : i32 to index
    %c0_13 = arith.constant 0 : index
    %45 = vector.load %arg2[%44, %c0_13] : memref<20x4xf32, #tpu.memory_space<vmem>>, vector<1x4xf32>
    %46 = arith.index_cast %c7_i32 : i32 to index
    %c0_14 = arith.constant 0 : index
    %47 = vector.load %arg3[%46, %c0_14] : memref<10x4xf32, #tpu.memory_space<vmem>>, vector<1x4xf32>
    tpu.vector_store %arg3[%46, %c0_14], %45 {strides = array<i32>} : memref<10x4xf32, #tpu.memory_space<vmem>>, vector<1x4xf32>,
    %c8_i32 = arith.constant 8 : i32
    %48 = arith.index_cast %c8_i32 : i32 to index
    %49 = memref.load %arg1[%48] : memref<10xi32, #tpu.memory_space<smem>>
    %50 = arith.index_cast %49 : i32 to index
    %c0_15 = arith.constant 0 : index
    %51 = vector.load %arg2[%50, %c0_15] : memref<20x4xf32, #tpu.memory_space<vmem>>, vector<1x4xf32>
    %52 = arith.index_cast %c8_i32 : i32 to index
    %c0_16 = arith.constant 0 : index
    %53 = vector.load %arg3[%52, %c0_16] : memref<10x4xf32, #tpu.memory_space<vmem>>, vector<1x4xf32>
    tpu.vector_store %arg3[%52, %c0_16], %51 {strides = array<i32>} : memref<10x4xf32, #tpu.memory_space<vmem>>, vector<1x4xf32>,
    %c9_i32 = arith.constant 9 : i32
    %54 = arith.index_cast %c9_i32 : i32 to index
    %55 = memref.load %arg1[%54] : memref<10xi32, #tpu.memory_space<smem>>
    %56 = arith.index_cast %55 : i32 to index
    %c0_17 = arith.constant 0 : index
    %57 = vector.load %arg2[%56, %c0_17] : memref<20x4xf32, #tpu.memory_space<vmem>>, vector<1x4xf32>
    %58 = arith.index_cast %c9_i32 : i32 to index
    %c0_18 = arith.constant 0 : index
    %59 = vector.load %arg3[%58, %c0_18] : memref<10x4xf32, #tpu.memory_space<vmem>>, vector<1x4xf32>
    tpu.vector_store %arg3[%58, %c0_18], %57 {strides = array<i32>} : memref<10x4xf32, #tpu.memory_space<vmem>>, vector<1x4xf32>,
    %c10_i32 = arith.constant 10 : i32
    return
  }
  func.func @transform_0(%arg0: i32, %arg1: memref<10xi32, #tpu.memory_space<smem>>) -> (i32, i32) {
    %c0_i32 = arith.constant 0 : i32
    %c0_i32_0 = arith.constant 0 : i32
    %c0_i32_1 = arith.constant 0 : i32
    return %c0_i32, %c0_i32_0 : i32, i32
  }
  func.func @transform_1(%arg0: i32, %arg1: memref<10xi32, #tpu.memory_space<smem>>) -> (i32, i32) {
    %c0_i32 = arith.constant 0 : i32
    %c0_i32_0 = arith.constant 0 : i32
    %c0_i32_1 = arith.constant 0 : i32
    return %c0_i32, %c0_i32_0 : i32, i32
  }
}

</mosaic_0001>

<llo_original>
// kernel: tpu_custom_call.1
$region0: #{tpu_custom_call.1}
  #allocation0 [shape = 'u32[]', space=smem, size = 0x4, offset = 0x4, fixed_abs, tag = 'smem constant byte address 0x4 - core index']
  #allocation1 [shape = 'u32[144,128]{1,0:T(1,128)}', space=vmem, size = 0x12000, scoped, tag = 'internal scratch']
  #allocation2 [shape = 's32[1]{0}', space=sflag, size = 0x4, scoped, tag = 'scoped memory for tpu_custom_call.1']
  #allocation3 [shape = 'u8[512]{0}', space=smem, size = 0x200, scoped, tag = 'prefetched SMEM operand 0']
  %s0 = inlined_call_operand.vmem [shape: s32[10], index: 0, kind: input, shape index: {}]
  %s1 = inlined_call_operand.vmem [shape: f32[20,4], index: 1, kind: input, shape index: {}]
  %s2 = inlined_call_operand.vmem [shape: f32[10,4], index: 2, kind: output, shape index: {}]
  %s3 = sld [smem:[#allocation0]]
  $region14: #{tpu_custom_call.1} parent=0
    _
  %s5 = ssub.s32 1, %s3
  %s6 = scalar_select 0, %s5, %s3
  %s7 = sshll.u32 %s0, 4
  %s8 = int_to_ptr.vmem [resolvable:$true] %s7
  %10 = dma.vmem_to_smem %s8, 16, [#allocation3], [#allocation2]
  %11 = dma.done [#allocation2], 16
  %12 = sfence
  // Predicated region
  $region2: #{tpu_custom_call.1} parent=0 // pred_check
    _
  $region3: #{tpu_custom_call.1} parent=0 // pred_check_branch
    %14 = sbr.rel (0) target = $region5
  $region4: #{tpu_custom_call.1} parent=0 // pred_region
    _
  $region5: #{tpu_custom_call.1} parent=0 // pred_fallthru
    _
  %s15 = sld [smem:[#allocation3]]
  %s16 = scalar_lea.vmem %s1, %s15
  %v17 = vld [vmem:[%s16] sm:$0x1]
  %vm18 = vcmask 24576
  %19 = vst.msk [vmem:[%s2] sm:$0x1] %vm18, %v17
  %s20 = sld [smem:[#allocation3 + $0x1]]
  %s21 = scalar_lea.vmem %s1, %s20
  %v22 = vld [vmem:[%s21] sm:$0x1]
  %23 = vst.msk [vmem:[%s2 + $0x1] sm:$0x1] %vm18, %v22
  %s24 = sld [smem:[#allocation3 + $0x2]]
  %s25 = scalar_lea.vmem %s1, %s24
  %v26 = vld [vmem:[%s25] sm:$0x1]
  %27 = vst.msk [vmem:[%s2 + $0x2] sm:$0x1] %vm18, %v26
  %s28 = sld [smem:[#allocation3 + $0x3]]
  %s29 = scalar_lea.vmem %s1, %s28
  %v30 = vld [vmem:[%s29] sm:$0x1]
  %31 = vst.msk [vmem:[%s2 + $0x3] sm:$0x1] %vm18, %v30
  %s32 = sld [smem:[#allocation3 + $0x4]]
  %s33 = scalar_lea.vmem %s1, %s32
  %v34 = vld [vmem:[%s33] sm:$0x1]
  %35 = vst.msk [vmem:[%s2 + $0x4] sm:$0x1] %vm18, %v34
  %s36 = sld [smem:[#allocation3 + $0x5]]
  %s37 = scalar_lea.vmem %s1, %s36
  %v38 = vld [vmem:[%s37] sm:$0x1]
  %39 = vst.msk [vmem:[%s2 + $0x5] sm:$0x1] %vm18, %v38
  %s40 = sld [smem:[#allocation3 + $0x6]]
  %s41 = scalar_lea.vmem %s1, %s40
  %v42 = vld [vmem:[%s41] sm:$0x1]
  %43 = vst.msk [vmem:[%s2 + $0x6] sm:$0x1] %vm18, %v42
  %s44 = sld [smem:[#allocation3 + $0x7]]
  %s45 = scalar_lea.vmem %s1, %s44
  %v46 = vld [vmem:[%s45] sm:$0x1]
  %47 = vst.msk [vmem:[%s2 + $0x7] sm:$0x1] %vm18, %v46
  %s48 = sld [smem:[#allocation3 + $0x8]]
  %s49 = scalar_lea.vmem %s1, %s48
  %v50 = vld [vmem:[%s49] sm:$0x1]
  %51 = vst.msk [vmem:[%s2 + $0x8] sm:$0x1] %vm18, %v50
  %s52 = sld [smem:[#allocation3 + $0x9]]
  %s53 = scalar_lea.vmem %s1, %s52
  %v54 = vld [vmem:[%s53] sm:$0x1]
  %55 = vst.msk [vmem:[%s2 + $0x9] sm:$0x1] %vm18, %v54
  // Predicated region
  $region6: #{tpu_custom_call.1} parent=0 // pred_check
    _
  $region7: #{tpu_custom_call.1} parent=0 // pred_check_branch
    %57 = sbr.rel (0) target = $region9
  $region8: #{tpu_custom_call.1} parent=0 // pred_region
    _
  $region9: #{tpu_custom_call.1} parent=0 // pred_fallthru
    _
  // Predicated region
  $region10: #{tpu_custom_call.1} parent=0 // pred_check
    _
  $region11: #{tpu_custom_call.1} parent=0 // pred_check_branch
    %59 = sbr.rel (0) target = $region13
  $region12: #{tpu_custom_call.1} parent=0 // pred_region
    _
  $region13: #{tpu_custom_call.1} parent=0 // pred_fallthru
    _

</llo_original>
